<compile_context>
chip_gen: v5e
topology: v5e:2x2
jax: 0.10.0
libtpu: 0.0.40
codegen_flags: <defaults>
</compile_context>

<pallas_src>
import math

import jax
import jax.numpy as jnp
from jax.experimental import pallas as pl
from jax.experimental.pallas import tpu as pltpu

F_IN = 4      # nn.Linear(4, 4) input features
F_OUT = 4     # nn.Linear(4, 4) output features (per head)
F2 = 2 * F_OUT
LANES = 128   # vreg lane width; fused output padded to one lane-dense slab
SUBLANES = 8  # fused param slab padded to a full (8, 128) vreg tile


def fused_mlp_kernel(x_ref, wb_ref, o_ref):
    """One MXU push + one VPU bias add + one unmasked lane-dense store.

    wb_ref layout (8, 128):
      rows 0..F_IN-1 : [w1.T | w2.T | 0-pad]   (F_IN, 128)
      row  F_IN      : [b1   | b2   | 0-pad]   (1, 128)
      rows F_IN+1..7 : zeros (sublane padding, never read)
    """
    w = wb_ref[0:F_IN, :]            # (F_IN, LANES) — static slice, no copy cost
    b = wb_ref[F_IN:F_IN + 1, :]     # (1, LANES) fused bias row
    o_ref[...] = (
        jnp.dot(x_ref[...], w, preferred_element_type=jnp.float32) + b
    ).astype(o_ref.dtype)


def prepare_fused_params(w1, b1, w2, b2):
    """One-time fusion/padding of the two Linear layers (hoisted out of the
    per-call jit path — do NOT rebuild this every forward)."""
    wb = jnp.zeros((SUBLANES, LANES), jnp.float32)
    wb = wb.at[:F_IN, :F_OUT].set(w1.T)        # head 1 weight, (in, out) layout
    wb = wb.at[:F_IN, F_OUT:F2].set(w2.T)      # head 2 weight
    wb = wb.at[F_IN, :F_OUT].set(b1)           # head 1 bias
    wb = wb.at[F_IN, F_OUT:F2].set(b2)         # head 2 bias
    return wb


@jax.jit
def mlp_forward_fused(x, wb_pad):
    """Returns the fused, lane-dense (B, 128) slab: [y1 | y2 | zeros]."""
    B = x.shape[0]
    return pl.pallas_call(
        fused_mlp_kernel,
        out_shape=jax.ShapeDtypeStruct((B, LANES), x.dtype),
        in_specs=[
            pl.BlockSpec(memory_space=pltpu.MemorySpace.VMEM),  # x: (B, 4) whole-array block
            pl.BlockSpec(memory_space=pltpu.MemorySpace.VMEM),  # fused W+b: (8, 128)
        ],
        out_specs=pl.BlockSpec(memory_space=pltpu.MemorySpace.VMEM),
        cost_estimate=pl.CostEstimate(
            flops=2 * B * F_IN * LANES,
            transcendentals=0,
            bytes_accessed=(B * F_IN + SUBLANES * LANES + B * LANES) * 4,
        ),
    )(x, wb_pad)


def mlp_forward(x, wb_pad):
    """Module-semantics wrapper: (linear1(x), linear2(x)).

    Prefer consuming the fused slab from mlp_forward_fused directly and
    splitting at the consumer to avoid the two tiny slice ops.
    """
    y = mlp_forward_fused(x, wb_pad)
    return y[:, :F_OUT], y[:, F_OUT:F2]


def init_linear_params(key, out_features, in_features):
    # Deterministic init mimicking torch.nn.Linear's default:
    # U(-1/sqrt(in_features), 1/sqrt(in_features)) for weight and bias.
    kw, kb = jax.random.split(key)
    bound = 1.0 / math.sqrt(in_features)
    w = jax.random.uniform(
        kw, (out_features, in_features), jnp.float32, minval=-bound, maxval=bound
    )
    b = jax.random.uniform(
        kb, (out_features,), jnp.float32, minval=-bound, maxval=bound
    )
    return w, b


if __name__ == "__main__":
    key = jax.random.PRNGKey(0)
    kx, k1, k2 = jax.random.split(key, 3)

    B = 8
    x = jax.random.normal(kx, (B, F_IN), jnp.float32)
    w1, b1 = init_linear_params(k1, F_OUT, F_IN)
    w2, b2 = init_linear_params(k2, F_OUT, F_IN)

    # One-time parameter fusion/padding (outside the per-call path).
    wb_pad = prepare_fused_params(w1, b1, w2, b2)
    jax.block_until_ready(wb_pad)

    y1, y2 = mlp_forward(x, wb_pad)
    jax.block_until_ready((y1, y2))

    # Pure-JAX reference check (PyTorch nn.Linear semantics: x @ W.T + b).
    ref1 = x @ w1.T + b1
    ref2 = x @ w2.T + b2
    assert jnp.allclose(y1, ref1, atol=1e-5, rtol=1e-5)
    assert jnp.allclose(y2, ref2, atol=1e-5, rtol=1e-5)

    print("KERNEL_OK")
</pallas_src>

<mosaic_0001>
module attributes {stable_mosaic.version = 11 : i64} {
  func.func @fused_mlp_kernel(%arg0: memref<8x4xf32, #tpu.memory_space<vmem>>, %arg1: memref<8x128xf32, #tpu.memory_space<vmem>>, %arg2: memref<8x128xf32, #tpu.memory_space<vmem>>) attributes {dimension_semantics = [], scalar_prefetch = 0 : i64, scratch_operands = 0 : i64, tpu.core_type = #tpu.core_type<tc>} {
    %c0 = arith.constant 0 : index
    %c0_0 = arith.constant 0 : index
    %0 = vector.load %arg1[%c0, %c0_0] : memref<8x128xf32, #tpu.memory_space<vmem>>, vector<4x128xf32>
    %c4 = arith.constant 4 : index
    %c0_1 = arith.constant 0 : index
    %1 = vector.load %arg1[%c4, %c0_1] : memref<8x128xf32, #tpu.memory_space<vmem>>, vector<1x128xf32>
    %c0_2 = arith.constant 0 : index
    %c0_3 = arith.constant 0 : index
    %2 = vector.load %arg0[%c0_2, %c0_3] : memref<8x4xf32, #tpu.memory_space<vmem>>, vector<8x4xf32>
    %cst = arith.constant dense<0.000000e+00> : vector<8x128xf32>
    %3 = tpu.matmul %2, %0, %cst {dimension_numbers = #tpu.dot_dimension_numbers<[1], [0], [0], [1], [0, 0, 1, 1], [], []>} : vector<8x4xf32>, vector<4x128xf32>, vector<8x128xf32> -> vector<8x128xf32>
    %4 = vector.broadcast %1 : vector<1x128xf32> to vector<8x128xf32>
    %5 = arith.addf %3, %4 : vector<8x128xf32>
    %c0_4 = arith.constant 0 : index
    %c0_5 = arith.constant 0 : index
    %6 = vector.load %arg2[%c0_4, %c0_5] : memref<8x128xf32, #tpu.memory_space<vmem>>, vector<8x128xf32>
    tpu.vector_store %arg2[%c0_4, %c0_5], %5 {strides = array<i32>} : memref<8x128xf32, #tpu.memory_space<vmem>>, vector<8x128xf32>,
    return
  }
}

</mosaic_0001>

<llo_original>
// kernel: mlp_forward_fused.1
$region0: #{mlp_forward_fused.1}
  #allocation0 [shape = 'u32[]', space=smem, size = 0x4, offset = 0x4, fixed_abs, tag = 'smem constant byte address 0x4 - core index']
  #allocation1 [shape = 'u32[72,128]{1,0:T(1,128)}', space=vmem, size = 0x9000, scoped, tag = 'internal scratch']
  %s0 = inlined_call_operand.vmem [shape: f32[8,4], index: 0, kind: input, shape index: {}]
  %s1 = inlined_call_operand.vmem [shape: f32[8,128], index: 1, kind: input, shape index: {}]
  %s2 = inlined_call_operand.hbm [shape: f32[8,128], index: 2, kind: output, shape index: {}]
  %s3 = sld [smem:[#allocation0]]
  $region18: #{mlp_forward_fused.1} parent=0
    _
  %s5 = ssub.s32 1, %s3
  %s6 = scalar_select 0, %s5, %s3
  $region1: #{mlp_forward_fused.1} parent=0
    #allocation2 [shape = 'u8[4096]{0}', space=vmem, size = 0x1000, scoped, tag = 'output window, operand 0, single buffered']
    #allocation3 [shape = 's32[1]{0}', space=sflag, size = 0x4, scoped, tag = 'scoped memory for mlp_forward_fused.1']
    %7 = vsyncpa [#allocation3], 0
    // Predicated region
    $region2: #{mlp_forward_fused.1} parent=1 // pred_check
      _
    $region3: #{mlp_forward_fused.1} parent=1 // pred_check_branch
      %9 = sbr.rel (0) target = $region5
    $region4: #{mlp_forward_fused.1} parent=1 // pred_region
      _
    $region5: #{mlp_forward_fused.1} parent=1 // pred_fallthru
      _
    // Predicated region
    $region6: #{mlp_forward_fused.1} parent=1 // pred_check
      _
    $region7: #{mlp_forward_fused.1} parent=1 // pred_check_branch
      %11 = sbr.rel (0) target = $region9
    $region8: #{mlp_forward_fused.1} parent=1 // pred_region
      _
    $region9: #{mlp_forward_fused.1} parent=1 // pred_fallthru
      _
    %v12 = vld [vmem:[%s1] sm:$0xf]
    %v13 = vld [vmem:[%s1 + $0x4] sm:$0x1]
    %v14 = vld [vmem:[%s0] sm:$0xff]
    %v15 = vperm.slane %v13, 0
    %vm16 = vcmask 31744
    %v18 = vsel %vm16, %v14, 0
    %vm20 = vcmask 1043456
    %v22 = vsel %vm20, %v12, 0
    %24 = vmatpush.msra.mxu0 0.0
    %25 = vmatpush.msra.mxu0 0.0
    %26 = vmatpush.msra.mxu0 0.0
    %27 = vmatpush.msra.mxu0 0.0
    %28 = vmatpush.msra.mxu0 0.0
    %29 = vmatpush.msra.mxu0 0.0
    %30 = vmatpush.msra.mxu0 0.0
    %31 = vmatpush.msra.mxu0 0.0
    %32 = vmatpush.msra.mxu0 0.0
    %33 = vmatpush.msra.mxu0 0.0
    %34 = vmatpush.msra.mxu0 0.0
    %35 = vmatpush.msra.mxu0 0.0
    %36 = vmatpush.msra.mxu0 0.0
    %37 = vmatpush.msra.mxu0 0.0
    %38 = vmatpush.msra.mxu0 0.0
    %39 = vmatpush.msra.mxu0 %v22
    %40 = vmatmul.f32.gmra.mxu0 %v18
    %v41 = vpop.f32.mrf.mxu0
    %v42 = vadd.f32 %v15, %v41
    %43 = vdwg.mxu0
    %44 = vst [vmem:[#allocation2] sm:$0xff] %v42
    // Predicated region
    $region10: #{mlp_forward_fused.1} parent=1 // pred_check
      _
    $region11: #{mlp_forward_fused.1} parent=1 // pred_check_branch
      %46 = sbr.rel (0) target = $region13
    $region12: #{mlp_forward_fused.1} parent=1 // pred_region
      %48 = vsyncadd [#allocation3], 0
      %s50 = sshll.u32 [#allocation2], 4
      %s51 = int_to_ptr.vmem [resolvable:$true] %s50
      %s52 = sshll.u32 %s2, 4
      %s53 = int_to_ptr.hbm [resolvable:$true] %s52
      %55 = dma.vmem_to_hbm [thread:$0]  %s51, 128, %s53, [#allocation3]
    $region13: #{mlp_forward_fused.1} parent=1 // pred_fallthru
      _
    // Predicated region
    $region14: #{mlp_forward_fused.1} parent=1 // pred_check
      _
    $region15: #{mlp_forward_fused.1} parent=1 // pred_check_branch
      %57 = sbr.rel (0) target = $region17
    $region16: #{mlp_forward_fused.1} parent=1 // pred_region
      %59 = dma.done [#allocation3], 128
    $region17: #{mlp_forward_fused.1} parent=1 // pred_fallthru
      _
    %60 = vsyncpa [#allocation3], 1

</llo_original>
